<compile_context>
chip_gen: v7x
topology: tpu7x:2x2x1
jax: 0.10.0
libtpu: 0.0.40
codegen_flags: <defaults>
</compile_context>

<pallas_src>
import functools

import jax
import jax.numpy as jnp
from jax import lax
from jax.experimental import pallas as pl
from jax.experimental.pallas import tpu as pltpu


def _rope_kernel(x_ref, cos_ref, sin_ref, o_ref, *, use_tpu_roll: bool):
    """One grid step.

    x_ref / o_ref : (tB, tS, D) block of the interleaved input / output.
    cos_ref       : (tS, D) f32, cos duplicated over each (even, odd) pair.
    sin_ref       : (tS, D) f32, sin duplicated with the (-, +) sign folded in.

    out[b, s, j] = x[b, s, j] * cos[s, j] + x[b, s, j ^ 1] * sin[s, j]
    """
    tB = x_ref.shape[0]
    D = x_ref.shape[-1]

    def roll1(v, amt):
        # One-lane rotation along the last axis; XLU op on TPU, jnp elsewhere
        # (interpret-mode / CPU checks).
        if use_tpu_roll:
            return pltpu.roll(v, amt, axis=v.ndim - 1)
        return jnp.roll(v, amt, axis=-1)

    # Pair-partner select mask, independent of the roll direction convention:
    # take_fwd[j] is True iff the +1 rotation places lane j^1 at lane j.
    lane = lax.broadcasted_iota(jnp.int32, (1, D), 1)
    want = lane + 1 - 2 * (lane % 2)                 # j ^ 1
    take_fwd = roll1(lane, 1) == want                # (1, D) bool

    cos = cos_ref[...]                               # (tS, D) f32
    sin = sin_ref[...]                               # (tS, D) f32, sign folded

    def body(b, carry):
        xb = x_ref[b].astype(jnp.float32)            # (tS, D)
        partner = jnp.where(take_fwd, roll1(xb, 1), roll1(xb, D - 1))
        o_ref[b] = (xb * cos + partner * sin).astype(o_ref.dtype)
        return carry

    lax.fori_loop(0, tB, body, None)


def _pick_tiles(B: int, S: int, D: int, itemsize: int):
    """Choose (tB, tS): batch rows and sequence rows per block.

    Per-step VMEM ~ tB*tS*io_row + tS*seq_row, where io_row covers the
    double-buffered x and out blocks and seq_row covers the double-buffered
    f32 tables plus the per-slab f32 temporaries used by the kernel body.
    """
    align = {4: 8, 2: 16, 1: 32}.get(itemsize, 8)    # packed sublane count
    io_row = 4 * D * itemsize                        # 2 bufs x (x + out)
    seq_row = 16 * D + 24 * D                        # tables (dbl-buf) + temps
    budget = 16 * 1024 * 1024

    # Sequence tile: full S if small, else largest aligned tile that still
    # leaves at least half the budget for batch rows.
    max_ts = max(align, (budget // 2) // (io_row + seq_row) // align * align)
    tS = S if S <= max_ts else max_ts

    # Batch tile: fill the remaining budget.
    rem = budget - tS * seq_row
    tB = int(min(B, max(1, rem // (tS * io_row))))

    # v7x megacore: make sure some "parallel" grid axis has >= 2 steps.
    if pl.cdiv(S, tS) == 1 and pl.cdiv(B, tB) == 1 and S >= 2 * align:
        half = -(-((S + 1) // 2) // align) * align
        if half < S:
            tS = half
    return tB, tS


def rotary_positional_encoding(x: jnp.ndarray, base: int = 10000) -> jnp.ndarray:
    """Applies interleaved-pair RoPE to x of shape (..., seq_len, d_model)."""
    assert x.ndim >= 2
    S, D = int(x.shape[-2]), int(x.shape[-1])
    assert D % 2 == 0
    orig_shape = x.shape
    x3 = x.reshape((-1, S, D))                       # flatten leading dims
    B = int(x3.shape[0])

    # (S, D) tables, computed once by XLA: cos duplicated per (even, odd)
    # pair; sin duplicated with the (-, +) sign pattern folded in.
    D2 = D // 2
    theta = jnp.asarray(float(base), jnp.float32) ** (
        -jnp.arange(D2, dtype=jnp.float32) / D2)
    ang = jnp.arange(S, dtype=jnp.float32)[:, None] * theta[None, :]   # (S, D2)
    cos_t = jnp.repeat(jnp.cos(ang), 2, axis=-1)                        # (S, D)
    sin_half = jnp.sin(ang)
    sin_t = jnp.stack([-sin_half, sin_half], axis=-1).reshape(S, D)     # (S, D)

    tB, tS = _pick_tiles(B, S, D, x.dtype.itemsize)
    # Batch is the inner grid axis so the table blocks (index depends only on
    # the sequence axis) are only re-fetched when the sequence tile changes.
    grid = (pl.cdiv(S, tS), pl.cdiv(B, tB))

    x_spec = pl.BlockSpec((tB, tS, D), lambda s, b: (b, s, 0))
    tab_spec = pl.BlockSpec((tS, D), lambda s, b: (s, 0))

    kernel = functools.partial(
        _rope_kernel, use_tpu_roll=(jax.default_backend() == "tpu"))

    out = pl.pallas_call(
        kernel,
        out_shape=jax.ShapeDtypeStruct((B, S, D), x.dtype),
        grid=grid,
        in_specs=[x_spec, tab_spec, tab_spec],
        out_specs=x_spec,
        compiler_params=pltpu.CompilerParams(
            dimension_semantics=("parallel", "parallel"),
            vmem_limit_bytes=32 * 1024 * 1024,
        ),
    )(x3, cos_t, sin_t)

    return out.reshape(orig_shape)


def _rope_reference(x: jnp.ndarray, base: int = 10000) -> jnp.ndarray:
    """Pure-JAX reference mirroring the PyTorch forward exactly."""
    S, D = x.shape[-2], x.shape[-1]
    D2 = D // 2
    theta = jnp.asarray(base, jnp.float32) ** (-jnp.arange(D2, dtype=jnp.float32) / D2)
    pos = jnp.arange(S, dtype=jnp.float32)[:, None]
    angles = pos * theta[None, :]
    cos, sin = jnp.cos(angles), jnp.sin(angles)
    xe, xo = x[..., 0::2], x[..., 1::2]
    oe = xe * cos - xo * sin
    oo = xo * cos + xe * sin
    return jnp.stack([oe, oo], axis=-1).reshape(x.shape)


if __name__ == "__main__":
    key = jax.random.PRNGKey(0)
    B, S, D = 2, 16, 128   # (batch, seq_len, d_model) -- lane-dense d_model
    x = jax.random.normal(key, (B, S, D), dtype=jnp.float32)

    out = jax.block_until_ready(rotary_positional_encoding(x))

    ref = _rope_reference(x)
    assert out.shape == x.shape and out.dtype == x.dtype
    assert jnp.allclose(out, ref, atol=1e-4, rtol=1e-4), "mismatch vs reference"

    print("KERNEL_OK")
</pallas_src>

<mosaic_0001>
module attributes {stable_mosaic.version = 11 : i64} {
  func.func @_rope_kernel(%arg0: i32, %arg1: i32, %arg2: memref<2x8x128xf32, #tpu.memory_space<vmem>>, %arg3: memref<8x128xf32, #tpu.memory_space<vmem>>, %arg4: memref<8x128xf32, #tpu.memory_space<vmem>>, %arg5: memref<2x8x128xf32, #tpu.memory_space<vmem>>) attributes {dimension_semantics = [#tpu.dimension_semantics<parallel>, #tpu.dimension_semantics<parallel>], iteration_bounds = array<i64: 2, 1>, scalar_prefetch = 0 : i64, scratch_operands = 0 : i64, tpu.core_type = #tpu.core_type<tc>, window_params = [{transform_indices = @transform_0, window_bounds = array<i64: 2, 8, 128>}, {transform_indices = @transform_1, window_bounds = array<i64: 8, 128>}, {transform_indices = @transform_2, window_bounds = array<i64: 8, 128>}, {transform_indices = @transform_3, window_bounds = array<i64: 2, 8, 128>}]} {
    %0 = tpu.iota {dimensions = array<i32: 1>} : vector<1x128xi32>
    %c1_i32 = arith.constant 1 : i32
    %1 = vector.broadcast %c1_i32 : i32 to vector<1x128xi32>
    %2 = arith.addi %0, %1 : vector<1x128xi32>
    %c2_i32 = arith.constant 2 : i32
    %c0_i32 = arith.constant 0 : i32
    %3 = arith.cmpi eq, %c2_i32, %c0_i32 : i32
    %c1_i32_0 = arith.constant 1 : i32
    %4 = arith.select %3, %c1_i32_0, %c2_i32 : i32
    %5 = vector.broadcast %4 : i32 to vector<1x128xi32>
    %6 = arith.remsi %0, %5 : vector<1x128xi32>
    %c0_i32_1 = arith.constant 0 : i32
    %7 = vector.broadcast %c0_i32_1 : i32 to vector<1x128xi32>
    %8 = arith.cmpi ne, %6, %7 : vector<1x128xi32>
    %c0_i32_2 = arith.constant 0 : i32
    %9 = vector.broadcast %c0_i32_2 : i32 to vector<1x128xi32>
    %10 = arith.cmpi slt, %6, %9 : vector<1x128xi32>
    %c0_i32_3 = arith.constant 0 : i32
    %11 = arith.cmpi slt, %4, %c0_i32_3 : i32
    %12 = vector.broadcast %11 : i1 to vector<1x128xi1>
    %13 = vector.broadcast %12 : vector<1x128xi1> to vector<1x128xi1>
    %14 = arith.xori %10, %13 : vector<1x128xi1>
    %15 = arith.andi %14, %8 : vector<1x128xi1>
    %16 = vector.broadcast %4 : i32 to vector<1x128xi32>
    %17 = arith.addi %6, %16 : vector<1x128xi32>
    %18 = arith.select %15, %17, %6 : vector<1x128xi1>, vector<1x128xi32>
    %c2_i32_4 = arith.constant 2 : i32
    %19 = vector.broadcast %c2_i32_4 : i32 to vector<1x128xi32>
    %20 = arith.muli %19, %18 : vector<1x128xi32>
    %21 = arith.subi %2, %20 : vector<1x128xi32>
    %22 = vector.extract_strided_slice %0 {offsets = [0, 127], sizes = [1, 1], strides = [1, 1]} : vector<1x128xi32> to vector<1x1xi32>
    %23 = vector.extract_strided_slice %0 {offsets = [0, 0], sizes = [1, 127], strides = [1, 1]} : vector<1x128xi32> to vector<1x127xi32>
    %24 = tpu.concatenate %22, %23 in 1 : vector<1x1xi32>, vector<1x127xi32> -> vector<1x128xi32>
    %25 = arith.cmpi eq, %24, %21 : vector<1x128xi32>
    %c0 = arith.constant 0 : index
    %c0_5 = arith.constant 0 : index
    %26 = vector.load %arg3[%c0, %c0_5] : memref<8x128xf32, #tpu.memory_space<vmem>>, vector<8x128xf32>
    %c0_6 = arith.constant 0 : index
    %c0_7 = arith.constant 0 : index
    %27 = vector.load %arg4[%c0_6, %c0_7] : memref<8x128xf32, #tpu.memory_space<vmem>>, vector<8x128xf32>
    %c0_i32_8 = arith.constant 0 : i32
    %c2_i32_9 = arith.constant 2 : i32
    %28 = arith.addi %c0_i32_8, %c2_i32_9 : i32
    %c1_i32_10 = arith.constant 1 : i32
    scf.for %arg6 = %c0_i32_8 to %28 step %c1_i32_10  : i32 {
      %29 = arith.index_cast %arg6 : i32 to index
      %c0_12 = arith.constant 0 : index
      %c0_13 = arith.constant 0 : index
      %30 = vector.load %arg2[%29, %c0_12, %c0_13] : memref<2x8x128xf32, #tpu.memory_space<vmem>>, vector<1x8x128xf32>
      %31 = vector.shape_cast %30 : vector<1x8x128xf32> to vector<8x128xf32>
      %32 = vector.extract_strided_slice %31 {offsets = [0, 127], sizes = [8, 1], strides = [1, 1]} : vector<8x128xf32> to vector<8x1xf32>
      %33 = vector.extract_strided_slice %31 {offsets = [0, 0], sizes = [8, 127], strides = [1, 1]} : vector<8x128xf32> to vector<8x127xf32>
      %34 = tpu.concatenate %32, %33 in 1 : vector<8x1xf32>, vector<8x127xf32> -> vector<8x128xf32>
      %35 = vector.extract_strided_slice %31 {offsets = [0, 1], sizes = [8, 127], strides = [1, 1]} : vector<8x128xf32> to vector<8x127xf32>
      %36 = vector.extract_strided_slice %31 {offsets = [0, 0], sizes = [8, 1], strides = [1, 1]} : vector<8x128xf32> to vector<8x1xf32>
      %37 = tpu.concatenate %35, %36 in 1 : vector<8x127xf32>, vector<8x1xf32> -> vector<8x128xf32>
      %38 = vector.shape_cast %25 : vector<1x128xi1> to vector<1x128xi1>
      %39 = vector.broadcast %38 : vector<1x128xi1> to vector<8x128xi1>
      %40 = arith.select %39, %34, %37 : vector<8x128xi1>, vector<8x128xf32>
      %41 = arith.mulf %31, %26 : vector<8x128xf32>
      %42 = arith.mulf %40, %27 : vector<8x128xf32>
      %43 = arith.addf %41, %42 : vector<8x128xf32>
      %44 = arith.index_cast %arg6 : i32 to index
      %c0_14 = arith.constant 0 : index
      %c0_15 = arith.constant 0 : index
      %45 = vector.load %arg5[%44, %c0_14, %c0_15] : memref<2x8x128xf32, #tpu.memory_space<vmem>>, vector<1x8x128xf32>
      %46 = vector.shape_cast %45 : vector<1x8x128xf32> to vector<8x128xf32>
      %47 = vector.shape_cast %43 : vector<8x128xf32> to vector<1x8x128xf32>
      tpu.vector_store %arg5[%44, %c0_14, %c0_15], %47 {strides = array<i32>} : memref<2x8x128xf32, #tpu.memory_space<vmem>>, vector<1x8x128xf32>,
    }
    %c2_i32_11 = arith.constant 2 : i32
    return
  }
  func.func @transform_0(%arg0: i32, %arg1: i32) -> (i32, i32, i32) {
    %c0_i32 = arith.constant 0 : i32
    %c0_i32_0 = arith.constant 0 : i32
    return %arg1, %arg0, %c0_i32 : i32, i32, i32
  }
  func.func @transform_1(%arg0: i32, %arg1: i32) -> (i32, i32) {
    %c0_i32 = arith.constant 0 : i32
    %c0_i32_0 = arith.constant 0 : i32
    return %arg0, %c0_i32 : i32, i32
  }
  func.func @transform_2(%arg0: i32, %arg1: i32) -> (i32, i32) {
    %c0_i32 = arith.constant 0 : i32
    %c0_i32_0 = arith.constant 0 : i32
    return %arg0, %c0_i32 : i32, i32
  }
  func.func @transform_3(%arg0: i32, %arg1: i32) -> (i32, i32, i32) {
    %c0_i32 = arith.constant 0 : i32
    %c0_i32_0 = arith.constant 0 : i32
    return %arg1, %arg0, %c0_i32 : i32, i32, i32
  }
}

</mosaic_0001>

<llo_original>
// kernel: tpu_custom_call.1
$region0: #{tpu_custom_call.1}
  #allocation0 [shape = 'u32[]', space=smem, size = 0x4, offset = 0x4, fixed_abs, tag = 'smem constant byte address 0x4 - core index']
  #allocation1 [shape = 'u32[144,128]{1,0:T(1,128)}', space=vmem, size = 0x12000, scoped, tag = 'internal scratch']
  %s0 = inlined_call_operand.hbm [shape: f32[2,16,128], index: 0, kind: input, shape index: {}]
  %s1 = inlined_call_operand.hbm [shape: f32[16,128], index: 1, kind: input, shape index: {}]
  %s2 = inlined_call_operand.hbm [shape: f32[16,128], index: 2, kind: input, shape index: {}]
  %s3 = inlined_call_operand.hbm [shape: f32[2,16,128], index: 3, kind: output, shape index: {}]
  %s4 = sld [smem:[#allocation0]]
  $region64: #{tpu_custom_call.1} parent=0
    _
  %s6 = ssub.s32 1, %s4
  %s7 = scalar_select 0, %s6, %s4
  $region1: #{tpu_custom_call.1} parent=0
    #allocation2 [shape = 'u8[16384]{0}', space=vmem, size = 0x4000, scoped, tag = 'input window, operand 0']
    #allocation3 [shape = 's32[2]{0}', space=sflag, size = 0x8, scoped, tag = 'scoped memory for tpu_custom_call.1']
    #allocation4 [shape = 's32[2]{0}', space=sflag, size = 0x8, scoped, tag = 'scoped memory for tpu_custom_call.1']
    #allocation5 [shape = 'u8[8192]{0}', space=vmem, size = 0x2000, scoped, tag = 'input window, operand 1']
    #allocation6 [shape = 's32[2]{0}', space=sflag, size = 0x8, scoped, tag = 'scoped memory for tpu_custom_call.1']
    #allocation7 [shape = 'u8[8192]{0}', space=vmem, size = 0x2000, scoped, tag = 'input window, operand 2']
    #allocation8 [shape = 'u8[16384]{0}', space=vmem, size = 0x4000, scoped, tag = 'output window, operand 0']
    %8 = vsyncpa [#allocation3], 0
    %s9 = scalar_lea.sflag [#allocation3], 1
    %10 = vsyncpa %s9, 0
    %11 = vsyncpa [#allocation6], 0
    %s12 = scalar_lea.sflag [#allocation6], 1
    %13 = vsyncpa %s12, 0
    %14 = vsyncpa [#allocation4], 0
    %s15 = scalar_lea.sflag [#allocation4], 1
    %16 = vsyncpa %s15, 0
    loop: start=0, step=1, limit=4
    $region2: #{tpu_custom_call.1} parent=1 // loop_pre_header
      _
    $region3: #{tpu_custom_call.1} parent=1 // loop_header
      %s18 = sphi 0, %s22
      %p19 = scmp.ge.s32.totalorder %s18, 4
      %s25 = sphi 0, %s37
      %s26 = sphi 0, %s33
      %s27 = sphi 0, %s25
      %s28 = sphi 0, %s26
      %s29 = sphi 0, %s27
      %s30 = sphi 0, %s28
      %s42 = sphi 0, %s44
      %s45 = sphi 0, %s42
      %s46 = sphi 0, %s45
      %s62 = sphi 0, %s46
      %s68 = sphi 0, %s70
      %s71 = sphi 0, %s68
      %s72 = sphi 0, %s71
      %s88 = sphi 0, %s72
      %s94 = sphi 0, %s96
      %s97 = sphi 0, %s94
      %s98 = sphi 0, %s97
      %s114 = sphi 0, %s98
      %s122 = sphi 0, %s124
      %s125 = sphi 0, %s122
      %s126 = sphi 0, %s125
      %s142 = sphi 0, %s126
    $region4: #{tpu_custom_call.1} parent=1 // loop_header_branch
      %21 = sbr.rel (%p19) target = $region8
    $region5: #{tpu_custom_call.1} parent=1 // loop_body
      %s23 = ssub.s32 %s18, 1
      %s24 = ssub.s32 %s18, 2
      %s31 = sadd.s32 1, %s26
      %p32 = scmp.ge.s32.totalorder %s31, 1
      %s33 = scalar_select %p32, 0, %s31
      %s34 = sadd.s32 1, %s25
      %s35 = scalar_select %p32, %s34, %s25
      %p36 = scmp.ge.s32.totalorder %s35, 2
      %s37 = scalar_select %p36, 0, %s35
      %s38 = ssub.s32 %s26, %s33
      %s39 = ssub.s32 %s25, %s37
      %s40 = sor.u32 %s38, %s39
      %p41 = scmp.eq.s32.totalorder %s40, 0
      %s43 = sadd.s32 %s42, 1
      %s44 = scalar_select %p41, %s42, %s43
      %p47 = pneg %p41
      %p48 = scmp.eq.s32.totalorder %s18, 1
      %p49 = por %p47, %p48
      %p50 = scmp.ne.s32.totalorder %s42, %s45
      %p51 = scmp.eq.s32.totalorder %s18, 0
      %p52 = por %p50, %p51
      %p53 = scmp.ne.s32.totalorder %s42, %s45
      %p54 = scmp.eq.s32.totalorder %s23, 1
      %p55 = por %p53, %p54
      %p56 = scmp.ne.s32.totalorder %s45, %s46
      %p57 = scmp.eq.s32.totalorder %s23, 0
      %p58 = por %p56, %p57
      %p59 = scmp.ne.s32.totalorder %s45, %s46
      %p60 = scmp.eq.s32.totalorder %s24, 1
      %p61 = por %p59, %p60
      %p63 = scmp.ne.s32.totalorder %s46, %s62
      %p64 = scmp.eq.s32.totalorder %s24, 0
      %p65 = por %p63, %p64
      %s66 = ssub.s32 %s25, %s37
      %p67 = scmp.eq.s32.totalorder %s66, 0
      %s69 = sadd.s32 %s68, 1
      %s70 = scalar_select %p67, %s68, %s69
      %p73 = pneg %p67
      %p74 = scmp.eq.s32.totalorder %s18, 1
      %p75 = por %p73, %p74
      %p76 = scmp.ne.s32.totalorder %s68, %s71
      %p77 = scmp.eq.s32.totalorder %s18, 0
      %p78 = por %p76, %p77
      %p79 = scmp.ne.s32.totalorder %s68, %s71
      %p80 = scmp.eq.s32.totalorder %s23, 1
      %p81 = por %p79, %p80
      %p82 = scmp.ne.s32.totalorder %s71, %s72
      %p83 = scmp.eq.s32.totalorder %s23, 0
      %p84 = por %p82, %p83
      %p85 = scmp.ne.s32.totalorder %s71, %s72
      %p86 = scmp.eq.s32.totalorder %s24, 1
      %p87 = por %p85, %p86
      %p89 = scmp.ne.s32.totalorder %s72, %s88
      %p90 = scmp.eq.s32.totalorder %s24, 0
      %p91 = por %p89, %p90
      %s92 = ssub.s32 %s25, %s37
      %p93 = scmp.eq.s32.totalorder %s92, 0
      %s95 = sadd.s32 %s94, 1
      %s96 = scalar_select %p93, %s94, %s95
      %p99 = pneg %p93
      %p100 = scmp.eq.s32.totalorder %s18, 1
      %p101 = por %p99, %p100
      %p102 = scmp.ne.s32.totalorder %s94, %s97
      %p103 = scmp.eq.s32.totalorder %s18, 0
      %p104 = por %p102, %p103
      %p105 = scmp.ne.s32.totalorder %s94, %s97
      %p106 = scmp.eq.s32.totalorder %s23, 1
      %p107 = por %p105, %p106
      %p108 = scmp.ne.s32.totalorder %s97, %s98
      %p109 = scmp.eq.s32.totalorder %s23, 0
      %p110 = por %p108, %p109
      %p111 = scmp.ne.s32.totalorder %s97, %s98
      %p112 = scmp.eq.s32.totalorder %s24, 1
      %p113 = por %p111, %p112
      %p115 = scmp.ne.s32.totalorder %s98, %s114
      %p116 = scmp.eq.s32.totalorder %s24, 0
      %p117 = por %p115, %p116
      %s118 = ssub.s32 %s26, %s33
      %s119 = ssub.s32 %s25, %s37
      %s120 = sor.u32 %s118, %s119
      %p121 = scmp.eq.s32.totalorder %s120, 0
      %s123 = sadd.s32 %s122, 1
      %s124 = scalar_select %p121, %s122, %s123
      %p127 = pneg %p121
      %p128 = scmp.eq.s32.totalorder %s18, 1
      %p129 = por %p127, %p128
      %p130 = scmp.ne.s32.totalorder %s122, %s125
      %p131 = scmp.eq.s32.totalorder %s18, 0
      %p132 = por %p130, %p131
      %p133 = scmp.ne.s32.totalorder %s122, %s125
      %p134 = scmp.eq.s32.totalorder %s23, 1
      %p135 = por %p133, %p134
      %p136 = scmp.ne.s32.totalorder %s125, %s126
      %p137 = scmp.eq.s32.totalorder %s23, 0
      %p138 = por %p136, %p137
      %p139 = scmp.ne.s32.totalorder %s125, %s126
      %p140 = scmp.eq.s32.totalorder %s24, 1
      %p141 = por %p139, %p140
      %p143 = scmp.ne.s32.totalorder %s126, %s142
      %p144 = scmp.eq.s32.totalorder %s24, 0
      %p145 = por %p143, %p144
      %p146 = scmp.le.s32.totalorder 1, %s18
      %p147 = scmp.lt.s32.totalorder %s18, 3
      %p148 = pnand %p146, %p147
      %p149 = pneg %p148
      // Predicated region
      $region9: #{tpu_custom_call.1} parent=5 // pred_check
        _
      $region10: #{tpu_custom_call.1} parent=5 // pred_check_branch
        %151 = sbr.rel (%p148) target = $region12
      $region11: #{tpu_custom_call.1} parent=5 // pred_region
        %s152 = ssub.s32 %s18, 1
      $region12: #{tpu_custom_call.1} parent=5 // pred_fallthru
        _
      %p153 = scmp.lt.s32.totalorder %s18, 2
      // Predicated region
      $region13: #{tpu_custom_call.1} parent=5 // pred_check
        %p154 = pneg %p153
      $region14: #{tpu_custom_call.1} parent=5 // pred_check_branch
        %156 = sbr.rel (%p154) target = $region16
      $region15: #{tpu_custom_call.1} parent=5 // pred_region
        // Predicated region
        $region17: #{tpu_custom_call.1} parent=15 // pred_check
          %p157 = pneg %p52
        $region18: #{tpu_custom_call.1} parent=15 // pred_check_branch
          %159 = sbr.rel (%p157) target = $region20
        $region19: #{tpu_custom_call.1} parent=15 // pred_region
          %s160 = sand.u32 %s42, 1
          %s161 = scalar_lea.sflag [#allocation3], %s160
          %s162 = sand.u32 %s42, 1
          %s163 = smul.addr %s162, 16
          %s164 = scalar_lea.vmem [#allocation2], %s163
          %s165 = smul.u32 2, %s26
          %s167 = ssub.s32 256, 256
          %168 = vsyncadd %s161, %s167
          %s169 = smul.addr %s165, 2
          %s170 = sadd.s32 %s25, %s169
          %s171 = smul.addr %s170, 128
          %s172 = scalar_lea.hbm %s0, %s171
          %s173 = sshll.u32 %s164, 4
          %s174 = int_to_ptr.vmem [resolvable:$true] %s173
          %179 = dma.hbm_to_vmem [thread:$0]  %s172, 256, %s174, %s161, 256, 128, 8
        $region20: #{tpu_custom_call.1} parent=15 // pred_fallthru
          _
        // Predicated region
        $region21: #{tpu_custom_call.1} parent=15 // pred_check
          %p180 = pneg %p78
        $region22: #{tpu_custom_call.1} parent=15 // pred_check_branch
          %182 = sbr.rel (%p180) target = $region24
        $region23: #{tpu_custom_call.1} parent=15 // pred_region
          %s183 = sand.u32 %s18, 1
          %s184 = scalar_lea.sflag [#allocation6], %s183
          %s185 = sand.u32 %s68, 1
          %s186 = smul.addr %s185, 8
          %s187 = scalar_lea.vmem [#allocation5], %s186
          %s189 = ssub.s32 128, 128
          %190 = vsyncadd %s184, %s189
          %s191 = smul.addr %s25, 128
          %s192 = scalar_lea.hbm %s1, %s191
          %s194 = sshll.u32 %s187, 4
          %s195 = int_to_ptr.vmem [resolvable:$true] %s194
          %197 = dma.hbm_to_vmem [thread:$0]  %s192, 128, %s195, %s184
        $region24: #{tpu_custom_call.1} parent=15 // pred_fallthru
          _
        // Predicated region
        $region25: #{tpu_custom_call.1} parent=15 // pred_check
          %p198 = pneg %p104
        $region26: #{tpu_custom_call.1} parent=15 // pred_check_branch
          %200 = sbr.rel (%p198) target = $region28
        $region27: #{tpu_custom_call.1} parent=15 // pred_region
          %s201 = sand.u32 %s18, 1
          %s202 = scalar_lea.sflag [#allocation6], %s201
          %s203 = sand.u32 %s94, 1
          %s204 = smul.addr %s203, 8
          %s205 = scalar_lea.vmem [#allocation7], %s204
          %s207 = ssub.s32 128, 128
          %208 = vsyncadd %s202, %s207
          %s209 = smul.addr %s25, 128
          %s210 = scalar_lea.hbm %s2, %s209
          %s212 = sshll.u32 %s205, 4
          %s213 = int_to_ptr.vmem [resolvable:$true] %s212
          %215 = dma.hbm_to_vmem [thread:$0]  %s210, 128, %s213, %s202
        $region28: #{tpu_custom_call.1} parent=15 // pred_fallthru
          _
      $region16: #{tpu_custom_call.1} parent=5 // pred_fallthru
        _
      %p216 = scmp.le.s32.totalorder 1, %s18
      %p217 = scmp.lt.s32.totalorder %s18, 3
      %p218 = pnand %p216, %p217
      %p219 = pneg %p218
      // Predicated region
      $region29: #{tpu_custom_call.1} parent=5 // pred_check
        _
      $region30: #{tpu_custom_call.1} parent=5 // pred_check_branch
        %221 = sbr.rel (%p218) target = $region32
      $region31: #{tpu_custom_call.1} parent=5 // pred_region
        %s222 = ssub.s32 %s18, 1
        %s223 = sand.u32 %s45, 1
        %s224 = scalar_lea.sflag [#allocation3], %s223
        %s225 = sand.u32 %s45, 1
        %s226 = smul.addr %s225, 16
        %s227 = scalar_lea.vmem [#allocation2], %s226
        // Predicated region
        $region33: #{tpu_custom_call.1} parent=31 // pred_check
          %p228 = pneg %p58
        $region34: #{tpu_custom_call.1} parent=31 // pred_check_branch
          %230 = sbr.rel (%p228) target = $region36
        $region35: #{tpu_custom_call.1} parent=31 // pred_region
          %231 = dma.done %s224, 256
        $region36: #{tpu_custom_call.1} parent=31 // pred_fallthru
          _
        %s232 = sand.u32 %s23, 1
        %s233 = scalar_lea.sflag [#allocation6], %s232
        %s234 = sand.u32 %s71, 1
        %s235 = smul.addr %s234, 8
        %s236 = scalar_lea.vmem [#allocation5], %s235
        // Predicated region
        $region37: #{tpu_custom_call.1} parent=31 // pred_check
          %p237 = pneg %p84
        $region38: #{tpu_custom_call.1} parent=31 // pred_check_branch
          %239 = sbr.rel (%p237) target = $region40
        $region39: #{tpu_custom_call.1} parent=31 // pred_region
          %240 = dma.done %s233, 128
        $region40: #{tpu_custom_call.1} parent=31 // pred_fallthru
          _
        %s241 = sand.u32 %s23, 1
        %s242 = scalar_lea.sflag [#allocation6], %s241
        %s243 = sand.u32 %s97, 1
        %s244 = smul.addr %s243, 8
        %s245 = scalar_lea.vmem [#allocation7], %s244
        // Predicated region
        $region41: #{tpu_custom_call.1} parent=31 // pred_check
          %p246 = pneg %p110
        $region42: #{tpu_custom_call.1} parent=31 // pred_check_branch
          %248 = sbr.rel (%p246) target = $region44
        $region43: #{tpu_custom_call.1} parent=31 // pred_region
          %249 = dma.done %s242, 128
        $region44: #{tpu_custom_call.1} parent=31 // pred_fallthru
          _
        %s250 = sand.u32 %s45, 1
        %s251 = scalar_lea.sflag [#allocation3], %s250
        %s252 = sand.u32 %s45, 1
        %s253 = smul.addr %s252, 16
        %s254 = scalar_lea.vmem [#allocation2], %s253
        %p255 = pneg %p58
        %p256 = pneg %p55
        %s257 = sand.u32 %s23, 1
        %s258 = scalar_lea.sflag [#allocation6], %s257
        %s259 = sand.u32 %s71, 1
        %s260 = smul.addr %s259, 8
        %s261 = scalar_lea.vmem [#allocation5], %s260
        %p262 = pneg %p84
        %p263 = pneg %p81
        %s264 = sand.u32 %s23, 1
        %s265 = scalar_lea.sflag [#allocation6], %s264
        %s266 = sand.u32 %s97, 1
        %s267 = smul.addr %s266, 8
        %s268 = scalar_lea.vmem [#allocation7], %s267
        %p269 = pneg %p110
        %p270 = pneg %p107
        %p271 = pneg %p138
        %p272 = pneg %p135
        %s273 = sand.u32 %s125, 1
        %s274 = scalar_lea.sflag [#allocation4], %s273
        %s275 = sand.u32 %s125, 1
        %s276 = smul.addr %s275, 16
        %s277 = scalar_lea.vmem [#allocation8], %s276
        %s278 = smul.u32 2, %s28
        %s279 = smul.u32 2, %s28
        %v280 = vlaneseq
        %v281 = vand.u32 %v280, 127
        %v282 = vadd.s32 %v281, 1
        %vm283 = vcmp.lt.s32.totalorder %v281, 0
        %v284 = vsub.s32 0, %v281
        %v285 = vsel %vm283, %v284, %v281
        %v286 = vshrl.u32 %v285, 1
        %v287 = vand.u32 %v285, 1
        %v288 = vsub.s32 0, %v287
        %v289 = vsel %vm283, %v288, %v287
        %vm290 = vcmp.ne.s32.totalorder %v289, 0
        %vm291 = vcmp.lt.s32.totalorder %v289, 0
        %vm292 = vmand %vm291, %vm290
        %v293 = vadd.s32 %v289, 2
        %v294 = vsel %vm292, %v293, %v289
        %v295 = vmul.u32 %v294, 2
        %v296 = vsub.s32 %v282, %v295
        %297 = vrot.lane.b32.xlu0 %v281, 1
        %v298 = vpop.permute.xlu0 %297
        %vm299 = vcmp.eq.s32.totalorder %v298, %v296
        %v300 = vld [vmem:[%s236] sm:$0xff]
        %v301 = vld [vmem:[%s245] sm:$0xff]
        loop: start=0, step=1, limit=2
        $region45: #{tpu_custom_call.1} parent=31 // loop_pre_header
          _
        $region46: #{tpu_custom_call.1} parent=31 // loop_header
          %s303 = sphi 0, %s307
          %p304 = scmp.ge.s32.totalorder %s303, 2
        $region47: #{tpu_custom_call.1} parent=31 // loop_header_branch
          %306 = sbr.rel (%p304) target = $region51
        $region48: #{tpu_custom_call.1} parent=31 // loop_body
          %s308 = smul.u32 %s303, 8
          %s309 = scalar_lea.vmem %s227, %s308 [#allocation2]
          %v310 = vld [vmem:[%s309] sm:$0xff]
          %312 = vrot.lane.b32.xlu0 %v310, 1
          %v313 = vpop.permute.xlu0 %312
          %315 = vrot.lane.b32.xlu0 %v310, 127
          %v316 = vpop.permute.xlu0 %315
          %v318 = vsel %vm299, 1, 0
          %v319 = vlaneseq
          %v320 = vshrl.u32 %v319, 7
          %v321 = vsub.s32 0, %v320
          %v322 = vrot.slane %v318, %v321
          %vm323 = vcmp.eq.s32.totalorder %v322, 1
          %v324 = vsel %vm323, %v313, %v316
          %v325 = vmul.f32 %v310, %v300
          %v326 = vmul.f32 %v324, %v301
          %v327 = vadd.f32 %v325, %v326
          %s328 = scalar_lea.vmem %s277, %s308 [#allocation8]
          %329 = vst [vmem:[%s328] sm:$0xff] %v327
        $region49: #{tpu_custom_call.1} parent=31 // loop_footer
          %s307 = sadd.s32 1, %s303
        $region50: #{tpu_custom_call.1} parent=31 // loop_footer_branch
          %302 = sbr.rel target = $region46
        $region51: #{tpu_custom_call.1} parent=31 // loop_exit
          _
        %s330 = sand.u32 %s125, 1
        %s331 = scalar_lea.sflag [#allocation4], %s330
        %s332 = sand.u32 %s125, 1
        %s333 = smul.addr %s332, 16
        %s334 = scalar_lea.vmem [#allocation8], %s333
        // Predicated region
        $region52: #{tpu_custom_call.1} parent=31 // pred_check
          %p335 = pneg %p135
        $region53: #{tpu_custom_call.1} parent=31 // pred_check_branch
          %337 = sbr.rel (%p335) target = $region55
        $region54: #{tpu_custom_call.1} parent=31 // pred_region
          %s338 = smul.u32 2, %s28
          %s340 = ssub.s32 256, 256
          %341 = vsyncadd %s331, %s340
          %s342 = smul.addr %s338, 2
          %s343 = sadd.s32 %s27, %s342
          %s344 = smul.addr %s343, 128
          %s345 = scalar_lea.hbm %s3, %s344
          %s346 = sshll.u32 %s334, 4
          %s347 = int_to_ptr.vmem [resolvable:$true] %s346
          %352 = dma.vmem_to_hbm [thread:$0]  %s347, 256, %s345, %s331, 128, 256, 8
        $region55: #{tpu_custom_call.1} parent=31 // pred_fallthru
          _
      $region32: #{tpu_custom_call.1} parent=5 // pred_fallthru
        _
      %p353 = scmp.le.s32.totalorder 2, %s18
      // Predicated region
      $region56: #{tpu_custom_call.1} parent=5 // pred_check
        %p354 = pneg %p353
      $region57: #{tpu_custom_call.1} parent=5 // pred_check_branch
        %356 = sbr.rel (%p354) target = $region59
      $region58: #{tpu_custom_call.1} parent=5 // pred_region
        %s357 = ssub.s32 %s18, 2
        // Predicated region
        $region60: #{tpu_custom_call.1} parent=58 // pred_check
          %p358 = pneg %p141
        $region61: #{tpu_custom_call.1} parent=58 // pred_check_branch
          %360 = sbr.rel (%p358) target = $region63
        $region62: #{tpu_custom_call.1} parent=58 // pred_region
          %s361 = sand.u32 %s126, 1
          %s362 = scalar_lea.sflag [#allocation4], %s361
          %s363 = sand.u32 %s126, 1
          %s364 = smul.addr %s363, 16
          %s365 = scalar_lea.vmem [#allocation8], %s364
          %366 = dma.done %s362, 256
        $region63: #{tpu_custom_call.1} parent=58 // pred_fallthru
          _
      $region59: #{tpu_custom_call.1} parent=5 // pred_fallthru
        _
    $region6: #{tpu_custom_call.1} parent=1 // loop_footer
      %s22 = sadd.s32 1, %s18
    $region7: #{tpu_custom_call.1} parent=1 // loop_footer_branch
      %17 = sbr.rel target = $region3
    $region8: #{tpu_custom_call.1} parent=1 // loop_exit
      _
    %367 = vsyncpa [#allocation3], 1
    %s368 = scalar_lea.sflag [#allocation3], 1
    %369 = vsyncpa %s368, 1
    %370 = vsyncpa [#allocation6], 1
    %s371 = scalar_lea.sflag [#allocation6], 1
    %372 = vsyncpa %s371, 1
    %373 = vsyncpa [#allocation4], 1
    %s374 = scalar_lea.sflag [#allocation4], 1
    %375 = vsyncpa %s374, 1

</llo_original>
